<compile_context>
chip_gen: v7x
topology: tpu7x:2x2x1
jax: 0.10.0
libtpu: 0.0.40
codegen_flags: <defaults>
</compile_context>

<pallas_src>
import functools

import numpy as np
import jax
import jax.numpy as jnp
from jax import lax
from jax.experimental import pallas as pl
from jax.experimental.pallas import tpu as pltpu


# ----------------------------------------------------------------------------
# Param preparation (host-side, runs once): spectral norm, weight lowering,
# conv-bias + BatchNorm folding.
# ----------------------------------------------------------------------------
def _spectral_norm_sigma(w, n_iter=30, seed=0):
    """Largest singular value of w.reshape(dim0, -1) via power iteration
    (PyTorch spectral_norm default: dim=0 for ConvTranspose weights)."""
    w_mat = np.asarray(w, np.float64).reshape(w.shape[0], -1)
    rng = np.random.RandomState(seed)
    u = rng.normal(size=(w_mat.shape[0],))
    u /= np.linalg.norm(u) + 1e-12
    v = None
    for _ in range(n_iter):
        v = w_mat.T @ u
        v /= np.linalg.norm(v) + 1e-12
        u = w_mat @ v
        u /= np.linalg.norm(u) + 1e-12
    sigma = float(u @ (w_mat @ v))
    return np.float32(sigma)


def prepare_params(raw, H, W, *, k_size, stride, padding, output_padding,
                   dilation, eps=1e-5):
    """Fold SN + conv bias + eval-mode BatchNorm into kernel-ready arrays."""
    w = np.asarray(raw["w"], np.float32)      # (Cin, Cout, k, k) ConvTranspose2d layout
    b = np.asarray(raw["b"], np.float32)      # (Cout,)
    gamma = np.asarray(raw["gamma"], np.float32)
    beta = np.asarray(raw["beta"], np.float32)
    mean = np.asarray(raw["running_mean"], np.float32)
    var = np.asarray(raw["running_var"], np.float32)

    Cin, Cout, kH, kW = w.shape
    assert kH == kW == k_size
    s, p, op, d = stride, padding, output_padding, dilation

    # Spectral normalization: divide the weight by its spectral norm.
    sigma = _spectral_norm_sigma(w)
    w_sn = w / sigma

    W_out = (W - 1) * s - 2 * p + d * (kW - 1) + op + 1
    W_pad = W_out + d * (kW - 1)
    Kb = W_pad * Cin
    N = W_out * Cout

    # BatchNorm fold: BN(conv + b) = scale * conv + shift (per out channel).
    inv_std = 1.0 / np.sqrt(var + eps)
    scale_c = gamma * inv_std                                   # (Cout,)
    shift_c = beta + scale_c * (b - mean)                       # (Cout,)

    # Lowered weight, K-folded over kH: row index kh*Kb + iw*Cin + cin, so one
    # whole output image row-block is a single MXU matmul.  Taps are spatially
    # flipped because transposed conv == correlation of the zero-inserted
    # input with the flipped kernel.  The BN scale is folded into the columns.
    w_low = np.zeros((kH, Kb, N), np.float32)
    for kh in range(kH):
        for kw in range(kW):
            tap = w_sn[:, :, kH - 1 - kh, kW - 1 - kw]          # (Cin, Cout)
            for ow in range(W_out):
                iw = ow + kw * d
                w_low[kh, iw * Cin:(iw + 1) * Cin,
                      ow * Cout:(ow + 1) * Cout] += tap
    w_low *= np.tile(scale_c, W_out)[None, None, :]             # fold BN scale
    w_fold = w_low.reshape(kH * Kb, N)

    shift_row = np.tile(shift_c, W_out)[None, :]                # (1, W_out*Cout)

    return {
        "w_fold": jnp.asarray(w_fold, jnp.bfloat16),            # bf16 MXU path
        "shift": jnp.asarray(shift_row, jnp.float32),
        # raw (spectrally-normalized) pieces for the reference check
        "w_sn": jnp.asarray(w_sn),
        "bias": jnp.asarray(b),
        "gamma": jnp.asarray(gamma), "beta": jnp.asarray(beta),
        "mean": jnp.asarray(mean), "var": jnp.asarray(var),
        "eps": eps,
    }


# ----------------------------------------------------------------------------
# Pallas kernel: one MXU matmul per grid step + folded affine + sigmoid.
# ----------------------------------------------------------------------------
def _kernel(x_ref, w_ref, shift_ref, o_ref):
    # (TB*H_out, kH*W_pad*Cin) bf16 @ (kH*W_pad*Cin, N) bf16 -> f32 accumulate.
    acc = jnp.dot(x_ref[...], w_ref[...], preferred_element_type=jnp.float32)
    y = acc + shift_ref[...]                  # folded conv-bias + BatchNorm
    o_ref[...] = jax.nn.sigmoid(y)            # logistic -> EUP slot


@functools.partial(jax.jit,
                   static_argnames=("k_size", "stride", "padding",
                                    "output_padding", "dilation", "batch_tile"))
def conv2d_trans_sn_bn_sigmoid(x, w_fold, shift, *,
                               k_size, stride, padding, output_padding,
                               dilation, batch_tile=16):
    """Forward of conv2DTransSNBatchNormSigmoid. x: NCHW, returns NCHW."""
    B, Cin, H, W = x.shape
    kH = kW = k_size
    s, p, op, d = stride, padding, output_padding, dilation

    H_out = (H - 1) * s - 2 * p + d * (kH - 1) + op + 1
    W_out = (W - 1) * s - 2 * p + d * (kW - 1) + op + 1
    H_pad = H_out + d * (kH - 1)
    W_pad = W_out + d * (kW - 1)
    N = shift.shape[1]
    Cout = N // W_out
    Kb = W_pad * Cin
    Kf = kH * Kb
    assert w_fold.shape == (Kf, N)

    # Grid sizing: >= 2 grid steps whenever B >= 2 (both v7x TensorCores busy,
    # DMA/compute overlap); batch_tile caps the per-step block for larger B.
    TB = max(1, min(batch_tile, -(-B // 2)))
    B_pad = -(-B // TB) * TB
    # (demo config: H_out=32 keeps TB*H_out a multiple of 16 for bf16 blocks)

    # --- XLA glue: NCHW -> NHWC (bf16), zero-insertion (stride) + boundary
    #     padding as a single lax.pad, flatten lanes to W_pad*Cin.
    off = d * (kH - 1) - p
    x_nhwc = jnp.transpose(x, (0, 2, 3, 1)).astype(jnp.bfloat16)
    hi_h = H_pad - (off + (H - 1) * s + 1)
    hi_w = W_pad - (off + (W - 1) * s + 1)
    x_padded = lax.pad(x_nhwc, jnp.asarray(0.0, jnp.bfloat16),
                       ((0, B_pad - B, 0),
                        (off, hi_h, s - 1),
                        (off, hi_w, s - 1),
                        (0, 0, 0)))
    x_flat = x_padded.reshape(B_pad, H_pad, Kb)

    # K-fold over kH: lhs row (b, oh) = concat_kh x_flat[b, oh + kh*d, :]
    lhs = jnp.concatenate(
        [x_flat[:, kh * d: kh * d + H_out, :] for kh in range(kH)], axis=-1)
    lhs = lhs.reshape(B_pad * H_out, Kf)                 # (B_pad*H_out, Kf) bf16

    out_flat = pl.pallas_call(
        _kernel,
        out_shape=jax.ShapeDtypeStruct((B_pad * H_out, N), jnp.float32),
        grid=(B_pad // TB,),
        in_specs=[
            pl.BlockSpec((TB * H_out, Kf), lambda i: (i, 0)),
            pl.BlockSpec((Kf, N), lambda i: (0, 0)),      # VMEM-resident weight
            pl.BlockSpec((1, N), lambda i: (0, 0)),       # VMEM-resident shift
        ],
        out_specs=pl.BlockSpec((TB * H_out, N), lambda i: (i, 0)),
        compiler_params=pltpu.CompilerParams(
            dimension_semantics=("parallel",)),
    )(lhs, w_fold, shift)

    out = out_flat[:B * H_out].reshape(B, H_out, W_out, Cout)
    return jnp.transpose(out, (0, 3, 1, 2))              # back to NCHW


# ----------------------------------------------------------------------------
# Pure-JAX reference (independent path: lhs-dilated conv + BN + sigmoid)
# ----------------------------------------------------------------------------
def reference_forward(x, prep, *, k_size, stride, padding, output_padding,
                      dilation):
    w_sn = prep["w_sn"]                           # (Cin, Cout, k, k)
    s, p, op, d = stride, padding, output_padding, dilation
    k = k_size
    # Transposed conv == lhs-dilated correlation with the flipped kernel.
    w_conv = jnp.transpose(w_sn, (1, 0, 2, 3))[:, :, ::-1, ::-1]  # (Cout,Cin,k,k)
    off = d * (k - 1) - p
    y = lax.conv_general_dilated(
        x.astype(jnp.float32), w_conv,
        window_strides=(1, 1),
        padding=((off, off + op), (off, off + op)),
        lhs_dilation=(s, s), rhs_dilation=(d, d),
        dimension_numbers=("NCHW", "OIHW", "NCHW"),
        precision=lax.Precision.HIGHEST)
    y = y + prep["bias"][None, :, None, None]
    inv = prep["gamma"] / jnp.sqrt(prep["var"] + prep["eps"])
    y = (y - prep["mean"][None, :, None, None]) * inv[None, :, None, None] \
        + prep["beta"][None, :, None, None]
    return jax.nn.sigmoid(y)


if __name__ == "__main__":
    # conv2DTransSNBatchNormSigmoid(4, 4, k_size=3, stride=2, padding=1,
    #                               output_padding=1, with_bn=True)
    # — a typical 2x decoder upsample: (2, 4, 16, 16) -> (2, 4, 32, 32).
    in_channels, n_filters, k_size = 4, 4, 3
    stride, padding, output_padding, dilation = 2, 1, 1, 1
    B, H, W = 2, 16, 16

    key = jax.random.PRNGKey(0)
    kx, kw, kb, kg, kbe, km, kv = jax.random.split(key, 7)

    x = jax.random.normal(kx, (B, in_channels, H, W), jnp.float32)

    bound = 1.0 / np.sqrt(in_channels * k_size * k_size)
    raw = {
        "w": jax.random.uniform(kw, (in_channels, n_filters, k_size, k_size),
                                jnp.float32, -bound, bound),
        "b": jax.random.uniform(kb, (n_filters,), jnp.float32, -bound, bound),
        "gamma": jax.random.uniform(kg, (n_filters,), jnp.float32, 0.5, 1.5),
        "beta": jax.random.uniform(kbe, (n_filters,), jnp.float32, -0.5, 0.5),
        "running_mean": jax.random.normal(km, (n_filters,), jnp.float32) * 0.1,
        "running_var": jax.random.uniform(kv, (n_filters,), jnp.float32, 0.5, 1.5),
    }

    prep = prepare_params(raw, H, W, k_size=k_size, stride=stride,
                          padding=padding, output_padding=output_padding,
                          dilation=dilation)

    out = conv2d_trans_sn_bn_sigmoid(
        x, prep["w_fold"], prep["shift"],
        k_size=k_size, stride=stride, padding=padding,
        output_padding=output_padding, dilation=dilation)
    out = jax.block_until_ready(out)

    H_out = (H - 1) * stride - 2 * padding + dilation * (k_size - 1) \
        + output_padding + 1
    assert out.shape == (B, n_filters, H_out, H_out), out.shape

    ref = reference_forward(x, prep, k_size=k_size, stride=stride,
                            padding=padding, output_padding=output_padding,
                            dilation=dilation)
    err = float(jnp.max(jnp.abs(out - ref)))
    assert err < 5e-3, f"max abs error {err}"

    print("KERNEL_OK")
</pallas_src>

<mosaic_0001>
module attributes {stable_mosaic.version = 11 : i64} {
  func.func @_kernel(%arg0: i32, %arg1: memref<32x408xbf16, #tpu.memory_space<vmem>>, %arg2: memref<408x128xbf16, #tpu.memory_space<vmem>>, %arg3: memref<1x128xf32, #tpu.memory_space<vmem>>, %arg4: memref<32x128xf32, #tpu.memory_space<vmem>>) attributes {dimension_semantics = [#tpu.dimension_semantics<parallel>], iteration_bounds = array<i64: 2>, scalar_prefetch = 0 : i64, scratch_operands = 0 : i64, tpu.core_type = #tpu.core_type<tc>, window_params = [{transform_indices = @transform_0, window_bounds = array<i64: 32, 408>}, {pipeline_mode = #tpu.pipeline_mode<synchronous>, transform_indices = @transform_1, window_bounds = array<i64: 408, 128>}, {pipeline_mode = #tpu.pipeline_mode<synchronous>, transform_indices = @transform_2, window_bounds = array<i64: 1, 128>}, {transform_indices = @transform_3, window_bounds = array<i64: 32, 128>}]} {
    %c0 = arith.constant 0 : index
    %c0_0 = arith.constant 0 : index
    %0 = vector.load %arg1[%c0, %c0_0] : memref<32x408xbf16, #tpu.memory_space<vmem>>, vector<32x408xbf16>
    %c0_1 = arith.constant 0 : index
    %c0_2 = arith.constant 0 : index
    %1 = vector.load %arg2[%c0_1, %c0_2] : memref<408x128xbf16, #tpu.memory_space<vmem>>, vector<408x128xbf16>
    %cst = arith.constant dense<0.000000e+00> : vector<32x128xf32>
    %2 = tpu.matmul %0, %1, %cst {dimension_numbers = #tpu.dot_dimension_numbers<[1], [0], [0], [1], [0, 0, 1, 1], [], []>} : vector<32x408xbf16>, vector<408x128xbf16>, vector<32x128xf32> -> vector<32x128xf32>
    %c0_3 = arith.constant 0 : index
    %c0_4 = arith.constant 0 : index
    %3 = vector.load %arg3[%c0_3, %c0_4] : memref<1x128xf32, #tpu.memory_space<vmem>>, vector<1x128xf32>
    %4 = vector.broadcast %3 : vector<1x128xf32> to vector<32x128xf32>
    %5 = arith.addf %2, %4 : vector<32x128xf32>
    %6 = arith.negf %5 : vector<32x128xf32>
    %7 = math.exp %6 : vector<32x128xf32>
    %cst_5 = arith.constant 1.000000e+00 : f32
    %8 = vector.broadcast %cst_5 : f32 to vector<32x128xf32>
    %9 = arith.addf %8, %7 : vector<32x128xf32>
    %10 = arith.divf %8, %9 : vector<32x128xf32>
    %c0_6 = arith.constant 0 : index
    %c0_7 = arith.constant 0 : index
    %11 = vector.load %arg4[%c0_6, %c0_7] : memref<32x128xf32, #tpu.memory_space<vmem>>, vector<32x128xf32>
    tpu.vector_store %arg4[%c0_6, %c0_7], %10 {strides = array<i32>} : memref<32x128xf32, #tpu.memory_space<vmem>>, vector<32x128xf32>,
    return
  }
  func.func @transform_0(%arg0: i32) -> (i32, i32) {
    %c0_i32 = arith.constant 0 : i32
    %c0_i32_0 = arith.constant 0 : i32
    return %arg0, %c0_i32 : i32, i32
  }
  func.func @transform_1(%arg0: i32) -> (i32, i32) {
    %c0_i32 = arith.constant 0 : i32
    %c0_i32_0 = arith.constant 0 : i32
    %c0_i32_1 = arith.constant 0 : i32
    return %c0_i32, %c0_i32_0 : i32, i32
  }
  func.func @transform_2(%arg0: i32) -> (i32, i32) {
    %c0_i32 = arith.constant 0 : i32
    %c0_i32_0 = arith.constant 0 : i32
    %c0_i32_1 = arith.constant 0 : i32
    return %c0_i32, %c0_i32_0 : i32, i32
  }
  func.func @transform_3(%arg0: i32) -> (i32, i32) {
    %c0_i32 = arith.constant 0 : i32
    %c0_i32_0 = arith.constant 0 : i32
    return %arg0, %c0_i32 : i32, i32
  }
}

</mosaic_0001>

<llo_original>
// kernel: conv2d_trans_sn_bn_sigmoid.1
$region0: #{conv2d_trans_sn_bn_sigmoid.1}
  #allocation0 [shape = 'u32[]', space=smem, size = 0x4, offset = 0x4, fixed_abs, tag = 'smem constant byte address 0x4 - core index']
  #allocation1 [shape = 'u32[144,128]{1,0:T(1,128)}', space=vmem, size = 0x12000, scoped, tag = 'internal scratch']
  %s0 = inlined_call_operand.vmem [shape: bf16[64,408], index: 0, kind: input, shape index: {}]
  %s1 = inlined_call_operand.vmem [shape: bf16[408,128], index: 1, kind: input, shape index: {}]
  %s2 = inlined_call_operand.vmem [shape: f32[1,128], index: 2, kind: input, shape index: {}]
  %s3 = inlined_call_operand.vmem [shape: f32[64,128], index: 3, kind: output, shape index: {}]
  %s4 = sld [smem:[#allocation0]]
  $region45: #{conv2d_trans_sn_bn_sigmoid.1} parent=0
    _
  %s6 = ssub.s32 1, %s4
  %s7 = scalar_select 0, %s6, %s4
  loop: start=0, step=1, limit=4
  $region2: #{conv2d_trans_sn_bn_sigmoid.1} parent=0 // loop_pre_header
    _
  $region3: #{conv2d_trans_sn_bn_sigmoid.1} parent=0 // loop_header
    %s9 = sphi 0, %s13
    %p10 = scmp.ge.s32.totalorder %s9, 4
    %s19 = sphi 0, %s21
    %s22 = sphi 0, %s19
    %s23 = sphi 0, %s22
    %s39 = sphi 0, %s23
    %s43 = sphi 0, %s43
    %s45 = sphi 0, %s43
    %s46 = sphi 0, %s45
    %s60 = sphi 0, %s46
    %s64 = sphi 0, %s64
    %s66 = sphi 0, %s64
    %s67 = sphi 0, %s66
    %s81 = sphi 0, %s67
    %s87 = sphi 0, %s89
    %s90 = sphi 0, %s87
    %s91 = sphi 0, %s90
    %s107 = sphi 0, %s91
  $region4: #{conv2d_trans_sn_bn_sigmoid.1} parent=0 // loop_header_branch
    %12 = sbr.rel (%p10) target = $region8
  $region5: #{conv2d_trans_sn_bn_sigmoid.1} parent=0 // loop_body
    %s14 = ssub.s32 %s9, 1
    %s15 = ssub.s32 %s9, 2
    %s16 = sadd.s32 %s9, 1
    %s17 = ssub.s32 %s9, %s16
    %p18 = scmp.eq.s32.totalorder %s17, 0
    %s20 = sadd.s32 %s19, 1
    %s21 = scalar_select %p18, %s19, %s20
    %p24 = pneg %p18
    %p25 = scmp.eq.s32.totalorder %s9, 1
    %p26 = por %p24, %p25
    %p27 = scmp.ne.s32.totalorder %s19, %s22
    %p28 = scmp.eq.s32.totalorder %s9, 0
    %p29 = por %p27, %p28
    %p30 = scmp.ne.s32.totalorder %s19, %s22
    %p31 = scmp.eq.s32.totalorder %s14, 1
    %p32 = por %p30, %p31
    %p33 = scmp.ne.s32.totalorder %s22, %s23
    %p34 = scmp.eq.s32.totalorder %s14, 0
    %p35 = por %p33, %p34
    %p36 = scmp.ne.s32.totalorder %s22, %s23
    %p37 = scmp.eq.s32.totalorder %s15, 1
    %p38 = por %p36, %p37
    %p40 = scmp.ne.s32.totalorder %s23, %s39
    %p41 = scmp.eq.s32.totalorder %s15, 0
    %p42 = por %p40, %p41
    %s44 = sadd.s32 %s43, 1
    %p47 = scmp.eq.s32.totalorder %s9, 1
    %p48 = scmp.ne.s32.totalorder %s43, %s45
    %p49 = scmp.eq.s32.totalorder %s9, 0
    %p50 = por %p48, %p49
    %p51 = scmp.ne.s32.totalorder %s43, %s45
    %p52 = scmp.eq.s32.totalorder %s14, 1
    %p53 = por %p51, %p52
    %p54 = scmp.ne.s32.totalorder %s45, %s46
    %p55 = scmp.eq.s32.totalorder %s14, 0
    %p56 = por %p54, %p55
    %p57 = scmp.ne.s32.totalorder %s45, %s46
    %p58 = scmp.eq.s32.totalorder %s15, 1
    %p59 = por %p57, %p58
    %p61 = scmp.ne.s32.totalorder %s46, %s60
    %p62 = scmp.eq.s32.totalorder %s15, 0
    %p63 = por %p61, %p62
    %s65 = sadd.s32 %s64, 1
    %p68 = scmp.eq.s32.totalorder %s9, 1
    %p69 = scmp.ne.s32.totalorder %s64, %s66
    %p70 = scmp.eq.s32.totalorder %s9, 0
    %p71 = por %p69, %p70
    %p72 = scmp.ne.s32.totalorder %s64, %s66
    %p73 = scmp.eq.s32.totalorder %s14, 1
    %p74 = por %p72, %p73
    %p75 = scmp.ne.s32.totalorder %s66, %s67
    %p76 = scmp.eq.s32.totalorder %s14, 0
    %p77 = por %p75, %p76
    %p78 = scmp.ne.s32.totalorder %s66, %s67
    %p79 = scmp.eq.s32.totalorder %s15, 1
    %p80 = por %p78, %p79
    %p82 = scmp.ne.s32.totalorder %s67, %s81
    %p83 = scmp.eq.s32.totalorder %s15, 0
    %p84 = por %p82, %p83
    %s85 = ssub.s32 %s9, %s16
    %p86 = scmp.eq.s32.totalorder %s85, 0
    %s88 = sadd.s32 %s87, 1
    %s89 = scalar_select %p86, %s87, %s88
    %p92 = pneg %p86
    %p93 = scmp.eq.s32.totalorder %s9, 1
    %p94 = por %p92, %p93
    %p95 = scmp.ne.s32.totalorder %s87, %s90
    %p96 = scmp.eq.s32.totalorder %s9, 0
    %p97 = por %p95, %p96
    %p98 = scmp.ne.s32.totalorder %s87, %s90
    %p99 = scmp.eq.s32.totalorder %s14, 1
    %p100 = por %p98, %p99
    %p101 = scmp.ne.s32.totalorder %s90, %s91
    %p102 = scmp.eq.s32.totalorder %s14, 0
    %p103 = por %p101, %p102
    %p104 = scmp.ne.s32.totalorder %s90, %s91
    %p105 = scmp.eq.s32.totalorder %s15, 1
    %p106 = por %p104, %p105
    %p108 = scmp.ne.s32.totalorder %s91, %s107
    %p109 = scmp.eq.s32.totalorder %s15, 0
    %p110 = por %p108, %p109
    %p111 = scmp.le.s32.totalorder 1, %s9
    %p112 = scmp.lt.s32.totalorder %s9, 3
    %p113 = pnand %p111, %p112
    %p114 = pneg %p113
    // Predicated region
    $region9: #{conv2d_trans_sn_bn_sigmoid.1} parent=5 // pred_check
      _
    $region10: #{conv2d_trans_sn_bn_sigmoid.1} parent=5 // pred_check_branch
      %116 = sbr.rel (%p113) target = $region12
    $region11: #{conv2d_trans_sn_bn_sigmoid.1} parent=5 // pred_region
      %s117 = ssub.s32 %s9, 1
      // Predicated region
      $region13: #{conv2d_trans_sn_bn_sigmoid.1} parent=11 // pred_check
        %p118 = pneg %p56
      $region14: #{conv2d_trans_sn_bn_sigmoid.1} parent=11 // pred_check_branch
        %120 = sbr.rel (%p118) target = $region16
      $region15: #{conv2d_trans_sn_bn_sigmoid.1} parent=11 // pred_region
        _
      $region16: #{conv2d_trans_sn_bn_sigmoid.1} parent=11 // pred_fallthru
        _
      // Predicated region
      $region17: #{conv2d_trans_sn_bn_sigmoid.1} parent=11 // pred_check
        %p121 = pneg %p77
      $region18: #{conv2d_trans_sn_bn_sigmoid.1} parent=11 // pred_check_branch
        %123 = sbr.rel (%p121) target = $region20
      $region19: #{conv2d_trans_sn_bn_sigmoid.1} parent=11 // pred_region
        _
      $region20: #{conv2d_trans_sn_bn_sigmoid.1} parent=11 // pred_fallthru
        _
    $region12: #{conv2d_trans_sn_bn_sigmoid.1} parent=5 // pred_fallthru
      _
    %p124 = scmp.lt.s32.totalorder %s9, 2
    // Predicated region
    $region21: #{conv2d_trans_sn_bn_sigmoid.1} parent=5 // pred_check
      %p125 = pneg %p124
    $region22: #{conv2d_trans_sn_bn_sigmoid.1} parent=5 // pred_check_branch
      %127 = sbr.rel (%p125) target = $region24
    $region23: #{conv2d_trans_sn_bn_sigmoid.1} parent=5 // pred_region
      // Predicated region
      $region25: #{conv2d_trans_sn_bn_sigmoid.1} parent=23 // pred_check
        %p128 = pneg %p29
      $region26: #{conv2d_trans_sn_bn_sigmoid.1} parent=23 // pred_check_branch
        %130 = sbr.rel (%p128) target = $region28
      $region27: #{conv2d_trans_sn_bn_sigmoid.1} parent=23 // pred_region
        %s131 = smul.u32 4, %s9
        %p132 = scmp.lt.s32.totalorder %s131, 7
        %s133 = scalar_select %p132, %s131, 7
        %s134 = smul.addr %s133, 4
        %s135 = smul.addr %s134, 4
        %s136 = scalar_lea.vmem %s0, %s135
        %s137 = smul.u32 4, %s9
      $region28: #{conv2d_trans_sn_bn_sigmoid.1} parent=23 // pred_fallthru
        _
    $region24: #{conv2d_trans_sn_bn_sigmoid.1} parent=5 // pred_fallthru
      _
    %p138 = scmp.le.s32.totalorder 1, %s9
    %p139 = scmp.lt.s32.totalorder %s9, 3
    %p140 = pnand %p138, %p139
    %p141 = pneg %p140
    // Predicated region
    $region29: #{conv2d_trans_sn_bn_sigmoid.1} parent=5 // pred_check
      _
    $region30: #{conv2d_trans_sn_bn_sigmoid.1} parent=5 // pred_check_branch
      %143 = sbr.rel (%p140) target = $region32
    $region31: #{conv2d_trans_sn_bn_sigmoid.1} parent=5 // pred_region
      %s144 = ssub.s32 %s9, 1
      %s145 = smul.u32 4, %s14
      %p146 = scmp.lt.s32.totalorder %s145, 7
      %s147 = scalar_select %p146, %s145, 7
      %s148 = smul.addr %s147, 4
      %s149 = smul.addr %s148, 4
      %s150 = scalar_lea.vmem %s0, %s149
      %p151 = pneg %p35
      %p152 = pneg %p32
      %p153 = pneg %p56
      %p154 = pneg %p53
      %p155 = pneg %p77
      %p156 = pneg %p74
      %p157 = pneg %p103
      %p158 = pneg %p100
      %s159 = smul.u32 4, %s14
      %p160 = scmp.lt.s32.totalorder %s159, 7
      %s161 = scalar_select %p160, %s159, 7
      %s162 = smul.addr %s161, 8
      %s163 = scalar_lea.vmem %s3, %s162
      %s164 = smul.u32 4, %s14
      %p165 = scmp.lt.s32.totalorder %s164, 7
      %s166 = scalar_select %p165, %s164, 7
      %s167 = smul.addr %s166, 4
      %s168 = smul.addr %s167, 4
      %s169 = scalar_lea.vmem %s0, %s168
      %s170 = smul.u32 4, %s14
      %s171 = smul.u32 4, %s14
      %p172 = scmp.lt.s32.totalorder %s171, 7
      %s173 = scalar_select %p172, %s171, 7
      %s174 = smul.addr %s173, 8
      %s175 = scalar_lea.vmem %s3, %s174
      %s176 = smul.u32 4, %s14
      %v178 = vld [vmem:[%s169] sm:$0xff]
      %v179 = vld [vmem:[%s169 + $0x8] sm:$0xff]
      %v180 = vld [vmem:[%s169 + $0x10] sm:$0xff]
      %v181 = vld [vmem:[%s169 + $0x18] sm:$0xff]
      %v182 = vld [vmem:[%s169 + $0x20] sm:$0xff]
      %v183 = vld [vmem:[%s169 + $0x28] sm:$0xff]
      %v184 = vld [vmem:[%s169 + $0x30] sm:$0xff]
      %v185 = vld [vmem:[%s169 + $0x38] sm:$0xff]
      %v186 = vld [vmem:[%s1] sm:$0xf]
      %v187 = vld [vmem:[%s1 + $0x4] sm:$0xf]
      %v188 = vld [vmem:[%s1 + $0x8] sm:$0xf]
      %v189 = vld [vmem:[%s1 + $0xc] sm:$0xf]
      %v190 = vld [vmem:[%s1 + $0x10] sm:$0xf]
      %v191 = vld [vmem:[%s1 + $0x14] sm:$0xf]
      %v192 = vld [vmem:[%s1 + $0x18] sm:$0xf]
      %v193 = vld [vmem:[%s1 + $0x1c] sm:$0xf]
      %v194 = vld [vmem:[%s1 + $0x20] sm:$0xf]
      %v195 = vld [vmem:[%s1 + $0x24] sm:$0xf]
      %v196 = vld [vmem:[%s1 + $0x28] sm:$0xf]
      %v197 = vld [vmem:[%s1 + $0x2c] sm:$0xf]
      %v198 = vld [vmem:[%s1 + $0x30] sm:$0xf]
      %v199 = vld [vmem:[%s1 + $0x34] sm:$0xf]
      %v200 = vld [vmem:[%s1 + $0x38] sm:$0xf]
      %v201 = vld [vmem:[%s1 + $0x3c] sm:$0xf]
      %v202 = vld [vmem:[%s1 + $0x40] sm:$0xf]
      %v203 = vld [vmem:[%s1 + $0x44] sm:$0xf]
      %v204 = vld [vmem:[%s1 + $0x48] sm:$0xf]
      %v205 = vld [vmem:[%s1 + $0x4c] sm:$0xf]
      %v206 = vld [vmem:[%s1 + $0x50] sm:$0xf]
      %v207 = vld [vmem:[%s1 + $0x54] sm:$0xf]
      %v208 = vld [vmem:[%s1 + $0x58] sm:$0xf]
      %v209 = vld [vmem:[%s1 + $0x5c] sm:$0xf]
      %v210 = vld [vmem:[%s1 + $0x60] sm:$0xf]
      %v211 = vld [vmem:[%s1 + $0x64] sm:$0xf]
      %v212 = vld [vmem:[%s1 + $0x68] sm:$0xf]
      %v213 = vld [vmem:[%s1 + $0x6c] sm:$0xf]
      %v214 = vld [vmem:[%s1 + $0x70] sm:$0xf]
      %v215 = vld [vmem:[%s1 + $0x74] sm:$0xf]
      %v216 = vld [vmem:[%s1 + $0x78] sm:$0xf]
      %v217 = vld [vmem:[%s1 + $0x7c] sm:$0xf]
      %v218 = vld [vmem:[%s1 + $0x80] sm:$0xf]
      %v219 = vld [vmem:[%s1 + $0x84] sm:$0xf]
      %v220 = vld [vmem:[%s1 + $0x88] sm:$0xf]
      %v221 = vld [vmem:[%s1 + $0x8c] sm:$0xf]
      %v222 = vld [vmem:[%s1 + $0x90] sm:$0xf]
      %v223 = vld [vmem:[%s1 + $0x94] sm:$0xf]
      %v224 = vld [vmem:[%s1 + $0x98] sm:$0xf]
      %v225 = vld [vmem:[%s1 + $0x9c] sm:$0xf]
      %v226 = vld [vmem:[%s1 + $0xa0] sm:$0xf]
      %v227 = vld [vmem:[%s1 + $0xa4] sm:$0xf]
      %v228 = vld [vmem:[%s1 + $0xa8] sm:$0xf]
      %v229 = vld [vmem:[%s1 + $0xac] sm:$0xf]
      %v230 = vld [vmem:[%s1 + $0xb0] sm:$0xf]
      %v231 = vld [vmem:[%s1 + $0xb4] sm:$0xf]
      %v232 = vld [vmem:[%s1 + $0xb8] sm:$0xf]
      %v233 = vld [vmem:[%s1 + $0xbc] sm:$0xf]
      %v234 = vld [vmem:[%s1 + $0xc0] sm:$0xf]
      %v235 = vld [vmem:[%s1 + $0xc4] sm:$0xf]
      %v236 = vld [vmem:[%s1 + $0xc8] sm:$0xf]
      %v237 = vld [vmem:[%s2] sm:$0x1]
      %v239 = vlaneseq
      %v240 = vshrl.u32 %v239, 7
      %v241 = vsub.s32 0, %v240
      %v242 = vrot.slane %v237, %v241
      %v252 = vunpack.c.l.b16 %v178
      %v253 = vunpack.c.h.b16 %v178
      %v254 = vunpack.c.l.b16 %v179
      %v255 = vunpack.c.h.b16 %v179
      %v256 = vunpack.c.l.b16 %v180
      %v257 = vunpack.c.h.b16 %v180
      %v258 = vunpack.c.l.b16 %v181
      %v259 = vunpack.c.h.b16 %v181
      %v260 = vunpack.c.l.b16 %v182
      %v261 = vunpack.c.h.b16 %v182
      %v262 = vunpack.c.l.b16 %v183
      %v263 = vunpack.c.h.b16 %v183
      %v264 = vunpack.c.l.b16 %v184
      %v265 = vunpack.c.h.b16 %v184
      %v266 = vunpack.c.l.b16 %v185
      %v267 = vunpack.c.h.b16 %v185
      %v268 = vpack.c.b16 %v256, %v252
      %v269 = vpack.c.b16 %v257, %v253
      %v270 = vpack.c.b16 %v258, %v254
      %v271 = vpack.c.b16 %v259, %v255
      %v272 = vpack.c.b16 %v264, %v260
      %v273 = vpack.c.b16 %v265, %v261
      %v274 = vpack.c.b16 %v266, %v262
      %v275 = vpack.c.b16 %v267, %v263
      %v333 = vunpack.c.l.b16 %v186
      %v334 = vunpack.c.l.b16 %v187
      %v335 = vunpack.c.l.b16 %v188
      %v336 = vunpack.c.l.b16 %v189
      %v337 = vunpack.c.l.b16 %v190
      %v338 = vunpack.c.l.b16 %v191
      %v339 = vunpack.c.l.b16 %v192
      %v340 = vunpack.c.l.b16 %v193
      %v341 = vunpack.c.l.b16 %v194
      %v342 = vunpack.c.l.b16 %v195
      %v343 = vunpack.c.l.b16 %v196
      %v344 = vunpack.c.l.b16 %v197
      %v345 = vunpack.c.l.b16 %v198
      %v346 = vunpack.c.l.b16 %v199
      %v347 = vunpack.c.l.b16 %v200
      %v348 = vunpack.c.l.b16 %v201
      %v349 = vunpack.c.l.b16 %v202
      %v350 = vunpack.c.l.b16 %v203
      %v351 = vunpack.c.l.b16 %v204
      %v352 = vunpack.c.l.b16 %v205
      %v353 = vunpack.c.l.b16 %v206
      %v354 = vunpack.c.l.b16 %v207
      %v355 = vunpack.c.l.b16 %v208
      %v356 = vunpack.c.l.b16 %v209
      %v357 = vunpack.c.l.b16 %v210
      %v358 = vunpack.c.l.b16 %v211
      %v359 = vunpack.c.l.b16 %v212
      %v360 = vunpack.c.l.b16 %v213
      %v361 = vunpack.c.l.b16 %v214
      %v362 = vunpack.c.l.b16 %v215
      %v363 = vunpack.c.l.b16 %v216
      %v364 = vunpack.c.l.b16 %v217
      %v365 = vunpack.c.l.b16 %v218
      %v366 = vunpack.c.l.b16 %v219
      %v367 = vunpack.c.l.b16 %v220
      %v368 = vunpack.c.l.b16 %v221
      %v369 = vunpack.c.l.b16 %v222
      %v370 = vunpack.c.l.b16 %v223
      %v371 = vunpack.c.l.b16 %v224
      %v372 = vunpack.c.l.b16 %v225
      %v373 = vunpack.c.l.b16 %v226
      %v374 = vunpack.c.l.b16 %v227
      %v375 = vunpack.c.l.b16 %v228
      %v376 = vunpack.c.l.b16 %v229
      %v377 = vunpack.c.l.b16 %v230
      %v378 = vunpack.c.l.b16 %v231
      %v379 = vunpack.c.l.b16 %v232
      %v380 = vunpack.c.l.b16 %v233
      %v381 = vunpack.c.l.b16 %v234
      %v382 = vunpack.c.l.b16 %v235
      %v383 = vunpack.c.l.b16 %v236
      %v384 = vpack.c.b16 %v334, %v333
      %v385 = vpack.c.b16 %v336, %v335
      %v386 = vpack.c.b16 %v338, %v337
      %v387 = vpack.c.b16 %v340, %v339
      %v388 = vpack.c.b16 %v342, %v341
      %v389 = vpack.c.b16 %v344, %v343
      %v390 = vpack.c.b16 %v346, %v345
      %v391 = vpack.c.b16 %v348, %v347
      %v392 = vpack.c.b16 %v350, %v349
      %v393 = vpack.c.b16 %v352, %v351
      %v394 = vpack.c.b16 %v354, %v353
      %v395 = vpack.c.b16 %v356, %v355
      %v396 = vpack.c.b16 %v358, %v357
      %v397 = vpack.c.b16 %v360, %v359
      %v398 = vpack.c.b16 %v362, %v361
      %v399 = vpack.c.b16 %v364, %v363
      %v400 = vpack.c.b16 %v366, %v365
      %v401 = vpack.c.b16 %v368, %v367
      %v402 = vpack.c.b16 %v370, %v369
      %v403 = vpack.c.b16 %v372, %v371
      %v404 = vpack.c.b16 %v374, %v373
      %v405 = vpack.c.b16 %v376, %v375
      %v406 = vpack.c.b16 %v378, %v377
      %v407 = vpack.c.b16 %v380, %v379
      %v408 = vpack.c.b16 %v382, %v381
      %v409 = vpack.c.b16 %v383, %v383
      %vm435 = vcmask 195584
      %v437 = vsel %vm435, %v271, 0
      %v440 = vsel %vm435, %v275, 0
      %vm442 = vcmask 1043456
      %v444 = vsel %vm442, %v409, 0
      %446 = vmatprep.subr.bf16.mxu0 0
      %447 = vmatpush1.bf16.msra.mxu0 %v384
      %448 = vmatprep.subr.bf16.mxu0 0
      %449 = vmatpush1.bf16.msra.mxu0 %v385
      %450 = vmatprep.subr.bf16.mxu0 0
      %451 = vmatpush1.bf16.msra.mxu0 %v386
      %452 = vmatprep.subr.bf16.mxu0 0
      %453 = vmatpush1.bf16.msra.mxu0 %v387
      %454 = vmatprep.subr.bf16.mxu0 0
      %455 = vmatpush1.bf16.msra.mxu0 %v388
      %456 = vmatprep.subr.bf16.mxu0 0
      %457 = vmatpush1.bf16.msra.mxu0 %v389
      %458 = vmatprep.subr.bf16.mxu0 0
      %459 = vmatpush1.bf16.msra.mxu0 %v390
      %460 = vmatprep.subr.bf16.mxu0 0
      %461 = vmatpush1.bf16.msra.mxu0 %v391
      %462 = vmatprep.subr.bf16.mxu0 0
      %463 = vmatpush1.bf16.msra.mxu0 %v392
      %464 = vmatprep.subr.bf16.mxu0 0
      %465 = vmatpush1.bf16.msra.mxu0 %v393
      %466 = vmatprep.subr.bf16.mxu0 0
      %467 = vmatpush1.bf16.msra.mxu0 %v394
      %468 = vmatprep.subr.bf16.mxu0 0
      %469 = vmatpush1.bf16.msra.mxu0 %v395
      %470 = vmatprep.subr.bf16.mxu0 0
      %471 = vmatpush1.bf16.msra.mxu0 %v396
      %472 = vmatprep.subr.bf16.mxu0 0
      %473 = vmatpush1.bf16.msra.mxu0 %v397
      %474 = vmatprep.subr.bf16.mxu0 0
      %475 = vmatpush1.bf16.msra.mxu0 %v398
      %476 = vmatprep.subr.bf16.mxu0 0
      %477 = vmatpush1.bf16.msra.mxu0 %v399
      %478 = vmatprep.mubr.bf16.mxu0 %v269
      %479 = vmatmul.mubr.bf16.gmra.mrb[0].mxu0 %v268
      %v480 = vpop.f32.mrb[0].mxu0
      %v481 = vadd.f32 %v242, %v480
      %v482 = vpop.f32.mrb[0].mxu0
      %v483 = vpop.f32.mrb[0].mxu0
      %v484 = vadd.f32 %v242, %v483
      %v485 = vpop.f32.mrb[0].mxu0
      %486 = vmatprep.mubr.bf16.mxu0 %v273
      %487 = vmatmul.mubr.bf16.gmra.mrb[0].mxu0 %v272
      %v488 = vpop.f32.mrb[0].mxu0
      %v489 = vadd.f32 %v242, %v488
      %v490 = vpop.f32.mrb[0].mxu0
      %v491 = vpop.f32.mrb[0].mxu0
      %v492 = vadd.f32 %v242, %v491
      %v493 = vpop.f32.mrb[0].mxu0
      %494 = vdwg.mxu0
      %495 = vmatprep.subr.bf16.mxu0 0
      %496 = vmatpush1.bf16.msra.mxu0 %v400
      %497 = vmatprep.subr.bf16.mxu0 0
      %498 = vmatpush1.bf16.msra.mxu0 %v401
      %499 = vmatprep.subr.bf16.mxu0 0
      %500 = vmatpush1.bf16.msra.mxu0 %v402
      %501 = vmatprep.subr.bf16.mxu0 0
      %502 = vmatpush1.bf16.msra.mxu0 %v403
      %503 = vmatprep.subr.bf16.mxu0 0
      %504 = vmatpush1.bf16.msra.mxu0 %v404
      %505 = vmatprep.subr.bf16.mxu0 0
      %506 = vmatpush1.bf16.msra.mxu0 %v405
      %507 = vmatprep.subr.bf16.mxu0 0
      %508 = vmatpush1.bf16.msra.mxu0 %v406
      %509 = vmatprep.subr.bf16.mxu0 0
      %510 = vmatpush1.bf16.msra.mxu0 %v407
      %511 = vmatprep.subr.bf16.mxu0 0
      %512 = vmatpush1.bf16.msra.mxu0 %v408
      %513 = vmatprep.subr.bf16.mxu0 0
      %514 = vmatpush1.bf16.msra.mxu0 %v444
      %515 = vmatprep.subr.bf16.mxu0 0
      %516 = vmatpush1.bf16.msra.mxu0 0
      %517 = vmatprep.subr.bf16.mxu0 0
      %518 = vmatpush1.bf16.msra.mxu0 0
      %519 = vmatprep.subr.bf16.mxu0 0
      %520 = vmatpush1.bf16.msra.mxu0 0
      %521 = vmatprep.subr.bf16.mxu0 0
      %522 = vmatpush1.bf16.msra.mxu0 0
      %523 = vmatprep.subr.bf16.mxu0 0
      %524 = vmatpush1.bf16.msra.mxu0 0
      %525 = vmatprep.subr.bf16.mxu0 0
      %526 = vmatpush1.bf16.msra.mxu0 0
      %527 = vmatprep.mubr.bf16.mxu0 %v437
      %528 = vmatmul.mubr.bf16.gmra.mrb[0].mxu0 %v270
      %v529 = vpop.f32.mrb[0].mxu0
      %v530 = vadd.f32 %v481, %v529
      %v531 = vpop.f32.mrb[0].mxu0
      %v532 = vpop.f32.mrb[0].mxu0
      %v533 = vadd.f32 %v484, %v532
      %v534 = vpop.f32.mrb[0].mxu0
      %535 = vmatprep.mubr.bf16.mxu0 %v440
      %536 = vmatmul.mubr.bf16.gmra.mrb[0].mxu0 %v274
      %v537 = vpop.f32.mrb[0].mxu0
      %v538 = vadd.f32 %v489, %v537
      %v539 = vpop.f32.mrb[0].mxu0
      %v540 = vpop.f32.mrb[0].mxu0
      %v541 = vadd.f32 %v492, %v540
      %v542 = vpop.f32.mrb[0].mxu0
      %543 = vdwg.mxu0
      %v544 = vxor.u32 %v530, 2147483648
      %v545 = vxor.u32 %v533, 2147483648
      %v546 = vxor.u32 %v538, 2147483648
      %v547 = vxor.u32 %v541, 2147483648
      %v548 = vmul.f32 %v544, 1.442695
      %v549 = vpow.pop %v548
      %v550 = vmul.f32 %v545, 1.442695
      %v551 = vpow.pop %v550
      %v552 = vmul.f32 %v546, 1.442695
      %v553 = vpow.pop %v552
      %v554 = vmul.f32 %v547, 1.442695
      %v555 = vpow.pop %v554
      %v556 = vadd.f32 %v549, 1.0
      %v557 = vadd.f32 %v551, 1.0
      %v558 = vadd.f32 %v553, 1.0
      %v559 = vadd.f32 %v555, 1.0
      %v560 = vrcp.pop %v556
      %v561 = vmul.f32 1.0, %v560
      %v562 = vrcp.pop %v557
      %v563 = vmul.f32 1.0, %v562
      %v564 = vrcp.pop %v558
      %v565 = vmul.f32 1.0, %v564
      %v566 = vrcp.pop %v559
      %v567 = vmul.f32 1.0, %v566
      %568 = vst [vmem:[%s175] sm:$0xff] %v561
      %569 = vst [vmem:[%s175 + $0x8] sm:$0xff] %v563
      %570 = vst [vmem:[%s175 + $0x10] sm:$0xff] %v565
      %571 = vst [vmem:[%s175 + $0x18] sm:$0xff] %v567
      %s572 = smul.u32 4, %s14
      %p573 = scmp.lt.s32.totalorder %s572, 7
      %s574 = scalar_select %p573, %s572, 7
      %s575 = smul.addr %s574, 8
      %s576 = scalar_lea.vmem %s3, %s575
      // Predicated region
      $region33: #{conv2d_trans_sn_bn_sigmoid.1} parent=31 // pred_check
        %p577 = pneg %p100
      $region34: #{conv2d_trans_sn_bn_sigmoid.1} parent=31 // pred_check_branch
        %579 = sbr.rel (%p577) target = $region36
      $region35: #{conv2d_trans_sn_bn_sigmoid.1} parent=31 // pred_region
        %s580 = smul.u32 4, %s14
      $region36: #{conv2d_trans_sn_bn_sigmoid.1} parent=31 // pred_fallthru
        _
    $region32: #{conv2d_trans_sn_bn_sigmoid.1} parent=5 // pred_fallthru
      _
    %p581 = scmp.le.s32.totalorder 2, %s9
    // Predicated region
    $region37: #{conv2d_trans_sn_bn_sigmoid.1} parent=5 // pred_check
      %p582 = pneg %p581
    $region38: #{conv2d_trans_sn_bn_sigmoid.1} parent=5 // pred_check_branch
      %584 = sbr.rel (%p582) target = $region40
    $region39: #{conv2d_trans_sn_bn_sigmoid.1} parent=5 // pred_region
      %s585 = ssub.s32 %s9, 2
      // Predicated region
      $region41: #{conv2d_trans_sn_bn_sigmoid.1} parent=39 // pred_check
        %p586 = pneg %p106
      $region42: #{conv2d_trans_sn_bn_sigmoid.1} parent=39 // pred_check_branch
        %588 = sbr.rel (%p586) target = $region44
      $region43: #{conv2d_trans_sn_bn_sigmoid.1} parent=39 // pred_region
        %s589 = smul.u32 4, %s15
        %p590 = scmp.lt.s32.totalorder %s589, 7
        %s591 = scalar_select %p590, %s589, 7
        %s592 = smul.addr %s591, 8
        %s593 = scalar_lea.vmem %s3, %s592
      $region44: #{conv2d_trans_sn_bn_sigmoid.1} parent=39 // pred_fallthru
        _
    $region40: #{conv2d_trans_sn_bn_sigmoid.1} parent=5 // pred_fallthru
      _
  $region6: #{conv2d_trans_sn_bn_sigmoid.1} parent=0 // loop_footer
    %s13 = sadd.s32 1, %s9
  $region7: #{conv2d_trans_sn_bn_sigmoid.1} parent=0 // loop_footer_branch
    %8 = sbr.rel target = $region3
  $region8: #{conv2d_trans_sn_bn_sigmoid.1} parent=0 // loop_exit
    _

</llo_original>
